<compile_context>
chip_gen: v6e
topology: v6e:2x2x1
jax: 0.10.0
libtpu: 0.0.40
codegen_flags: <defaults>
</compile_context>

<pallas_src>
import jax
import jax.numpy as jnp
import numpy as np
from jax.experimental import pallas as pl
from jax.experimental.pallas import tpu as pltpu


# ---------------------------------------------------------------------------
# Kernel 1: fc1 partial contraction (the only HBM-heavy part: streams w1).
# ---------------------------------------------------------------------------
def _fc1_partial_kernel(x_ref, w1_ref, out_ref):
    # Grid = (num_k_splits, k_steps). The (1, B, H1) fp32 output block is
    # resident across the k axis (same block index for every k), so it acts
    # as the accumulator and is written back to HBM once per split.
    @pl.when(pl.program_id(1) == 0)
    def _():
        out_ref[...] = jnp.zeros_like(out_ref)

    out_ref[...] += jnp.dot(
        x_ref[...], w1_ref[...],
        preferred_element_type=jnp.float32)[None, :, :]


# ---------------------------------------------------------------------------
# Kernel 2: tiny epilogue — combine K-split partials, bias+relu, fc2, fc3.
# Single invocation, every operand resident in VMEM (~70 KiB total).
# ---------------------------------------------------------------------------
def _epilogue_kernel(p_ref, b1_ref, w2_ref, b2_ref, w3_ref, b3_ref, out_ref):
    h1 = jnp.maximum(jnp.sum(p_ref[...], axis=0) + b1_ref[...], 0.0)   # relu(fc1)
    h2 = jnp.maximum(
        jnp.dot(h1, w2_ref[...], preferred_element_type=jnp.float32)
        + b2_ref[...], 0.0)                                            # relu(fc2)
    out = (jnp.dot(h2, w3_ref[...], preferred_element_type=jnp.float32)
           + b3_ref[...])                                              # fc3
    out_ref[...] = out.astype(out_ref.dtype)


# ---------------------------------------------------------------------------
# Hardware-aware sizing helpers (all guarded; fall back to safe defaults).
# ---------------------------------------------------------------------------
def _physical_vmem_bytes():
    try:
        return int(pltpu.get_tpu_info().vmem_capacity_bytes)
    except Exception:
        return 64 << 20          # conservative: v7x per-TC VMEM


def _num_tensorcores_per_chip():
    """2 on chips with 2 TensorCores/chip (v7x); 1 on v5e/v6e/unknown."""
    try:
        kind = jax.devices()[0].device_kind.lower()
    except Exception:
        return 1
    return 2 if ("v7" in kind or "tpu7" in kind) else 1


def _pick_k_tile(k_per_split, batch, h1, itemsize, vmem_phys):
    """Largest K tile that divides k_per_split and keeps the double-buffered
    streamed tiles (w1 + x) comfortably inside VMEM."""
    budget = min(vmem_phys // 2, 40 << 20)
    for cand in (98304, 65536, 49152, 32768, 16384, 8192,
                 4096, 2048, 1024, 512, 256, 128):
        if cand <= k_per_split and k_per_split % cand == 0:
            if 2 * cand * (h1 + batch) * itemsize <= budget:
                return cand
    return k_per_split           # tiny problems: single step


# ---------------------------------------------------------------------------
# Public API
# ---------------------------------------------------------------------------
def prepare_fc1_weight(w1, compute_dtype=jnp.bfloat16):
    """One-time (init-time) cast of the big fc1 weight to the streaming dtype.

    Do NOT cast per call: a per-call fp32->bf16 cast of the ~200 MB fc1 weight
    reads/writes ~3x the kernel's own HBM traffic and dominates wall time.
    """
    return jnp.asarray(w1, dtype=compute_dtype)


def roberta_classifier_head(x_flat, w1, b1, w2, b2, w3, b3, *,
                            num_k_splits=None, tk=None,
                            compute_dtype=jnp.bfloat16):
    """Classifier head: relu(fc1) -> relu(fc2) -> fc3.

    x_flat: (B, K) flattened last_hidden_state.
    w1:     (K, H1) fc1 weight, ALREADY in `compute_dtype`
            (use prepare_fc1_weight once at init).
    """
    B, K = x_flat.shape
    H1 = w1.shape[1]          # 128
    H2 = w2.shape[1]          # 128
    C = w3.shape[1]           # 2

    if w1.dtype != jnp.dtype(compute_dtype):
        raise ValueError(
            "w1 must be pre-cast to compute_dtype once at init via "
            "prepare_fc1_weight; a per-call cast costs ~3x the kernel's own "
            "HBM traffic.")

    itemsize = jnp.dtype(compute_dtype).itemsize
    vmem_phys = _physical_vmem_bytes()

    # One K-split per TensorCore: on v7x the leading "parallel" grid axis lets
    # both cores stream disjoint contiguous halves of w1. v5e/v6e: 1 split.
    if num_k_splits is None:
        num_k_splits = _num_tensorcores_per_chip()
    if num_k_splits > 1 and K % (num_k_splits * 128) != 0:
        num_k_splits = 1
    k_per_split = K // num_k_splits

    if tk is None:
        tk = _pick_k_tile(k_per_split, B, H1, itemsize, vmem_phys)
    assert k_per_split % tk == 0, "K tile must divide per-split K"
    steps = k_per_split // tk

    # x is tiny relative to w1; a per-call cast here is negligible.
    xs = x_flat.astype(compute_dtype)

    # VMEM budget: double-buffered streamed tiles + resident partial block,
    # ~1.5x headroom, capped at 3/4 of physical VMEM and at 48 MiB.
    stream_bytes = 2 * tk * (H1 + B) * itemsize
    resident_bytes = 2 * B * H1 * 4
    cap = max(min((vmem_phys * 3) // 4, 48 << 20), 32 << 20)
    vmem_limit = min(max(int((stream_bytes + resident_bytes) * 1.5), 16 << 20),
                     cap)

    cost = pl.CostEstimate(
        flops=2 * B * K * H1,
        transcendentals=0,
        bytes_accessed=(K * H1 + B * K) * itemsize + num_k_splits * B * H1 * 4)

    partials = pl.pallas_call(
        _fc1_partial_kernel,
        out_shape=jax.ShapeDtypeStruct((num_k_splits, B, H1), jnp.float32),
        grid_spec=pltpu.PrefetchScalarGridSpec(
            num_scalar_prefetch=0,
            grid=(num_k_splits, steps),
            in_specs=[
                pl.BlockSpec((B, tk), lambda s, k: (0, s * steps + k)),   # x
                pl.BlockSpec((tk, H1), lambda s, k: (s * steps + k, 0)),  # w1
            ],
            out_specs=pl.BlockSpec((1, B, H1), lambda s, k: (s, 0, 0)),
        ),
        compiler_params=pltpu.CompilerParams(
            dimension_semantics=("parallel", "arbitrary"),
            vmem_limit_bytes=vmem_limit),
        cost_estimate=cost,
    )(xs, w1)

    # Tiny one-shot epilogue kernel (combine + biases + relus + fc2 + fc3).
    return pl.pallas_call(
        _epilogue_kernel,
        out_shape=jax.ShapeDtypeStruct((B, C), jnp.float32),
    )(partials, b1, w2, b2, w3, b3)


# ---------------------------------------------------------------------------
# Demo / self-test
# ---------------------------------------------------------------------------
def _torch_linear_init(key, fan_in, fan_out):
    """Deterministic init matching torch.nn.Linear default (U(+-1/sqrt(fan_in)))."""
    kw, kb = jax.random.split(key)
    bound = 1.0 / np.sqrt(fan_in)
    w = jax.random.uniform(kw, (fan_in, fan_out), jnp.float32, -bound, bound)
    b = jax.random.uniform(kb, (1, fan_out), jnp.float32, -bound, bound)
    return w, b


def _ref_head_np(x, w1, b1, w2, b2, w3, b3):
    """Exact fp32 reference of the PyTorch head (numpy, fp32 accumulation)."""
    x = np.asarray(x, np.float32)
    h1 = np.maximum(x @ np.asarray(w1, np.float32) + np.asarray(b1, np.float32), 0.0)
    h2 = np.maximum(h1 @ np.asarray(w2, np.float32) + np.asarray(b2, np.float32), 0.0)
    return h2 @ np.asarray(w3, np.float32) + np.asarray(b3, np.float32)


if __name__ == "__main__":
    # Small stand-in for the real (B, S=512, H=768) -> K=393216 shapes.
    B, S, H = 2, 8, 32          # K = 256
    K = S * H
    H1, H2, C = 128, 128, 2

    key = jax.random.PRNGKey(0)
    k_x, k1, k2, k3 = jax.random.split(key, 4)

    # TODO(synk): model(**x) pretrained rubert backbone has no in-script
    # Pallas equivalent; we consume its last_hidden_state directly.
    last_hidden_state = jax.random.normal(k_x, (B, S, H), jnp.float32)
    x_flat = last_hidden_state.reshape(B, -1)        # torch .view(B, -1)

    w1, b1 = _torch_linear_init(k1, K, H1)
    w2, b2 = _torch_linear_init(k2, H1, H2)
    w3, b3 = _torch_linear_init(k3, H2, C)

    ref = _ref_head_np(x_flat, w1, b1, w2, b2, w3, b3)

    # 1) fp32 streaming path, both K-split variants (exercises the v7x
    #    dual-core split and the single-core path regardless of host chip).
    for splits in (1, 2):
        out = roberta_classifier_head(
            x_flat, w1, b1, w2, b2, w3, b3,
            num_k_splits=splits, compute_dtype=jnp.float32)
        out = jax.block_until_ready(out)
        np.testing.assert_allclose(np.asarray(out), ref, rtol=5e-3, atol=5e-3)

    # 2) Default path: chip-detected splits, bf16 streaming (fp32 accumulate),
    #    validated against the fp32 reference with a looser tolerance.
    w1_bf16 = prepare_fc1_weight(w1, jnp.bfloat16)   # one-time init-time cast
    out = roberta_classifier_head(x_flat, w1_bf16, b1, w2, b2, w3, b3)
    out = jax.block_until_ready(out)
    np.testing.assert_allclose(np.asarray(out), ref, rtol=2e-2, atol=2e-2)

    print("KERNEL_OK")
</pallas_src>

<mosaic_0001>
module attributes {stable_mosaic.version = 11 : i64} {
  func.func @_fc1_partial_kernel(%arg0: i32, %arg1: i32, %arg2: memref<2x256xf32, #tpu.memory_space<vmem>>, %arg3: memref<256x128xf32, #tpu.memory_space<vmem>>, %arg4: memref<1x2x128xf32, #tpu.memory_space<vmem>>) attributes {dimension_semantics = [#tpu.dimension_semantics<parallel>, #tpu.dimension_semantics<arbitrary>], iteration_bounds = array<i64: 1, 1>, scalar_prefetch = 0 : i64, scratch_operands = 0 : i64, tpu.core_type = #tpu.core_type<tc>, window_params = [{transform_indices = @transform_0, window_bounds = array<i64: 2, 256>}, {transform_indices = @transform_1, window_bounds = array<i64: 256, 128>}, {transform_indices = @transform_2, window_bounds = array<i64: 1, 2, 128>}]} {
    %c0_i32 = arith.constant 0 : i32
    %0 = arith.cmpi eq, %arg1, %c0_i32 : i32
    %1 = arith.extui %0 : i1 to i32
    %c0_i32_0 = arith.constant 0 : i32
    %2 = arith.cmpi ne, %1, %c0_i32_0 : i32
    scf.if %2 {
      %cst_10 = arith.constant 0.000000e+00 : f32
      %10 = vector.broadcast %cst_10 : f32 to vector<1x2x128xf32>
      %c0_11 = arith.constant 0 : index
      %c0_12 = arith.constant 0 : index
      %c0_13 = arith.constant 0 : index
      %11 = vector.load %arg4[%c0_11, %c0_12, %c0_13] : memref<1x2x128xf32, #tpu.memory_space<vmem>>, vector<1x2x128xf32>
      tpu.vector_store %arg4[%c0_11, %c0_12, %c0_13], %10 {strides = array<i32>} : memref<1x2x128xf32, #tpu.memory_space<vmem>>, vector<1x2x128xf32>,
    } else {
    }
    %c0 = arith.constant 0 : index
    %c0_1 = arith.constant 0 : index
    %c0_2 = arith.constant 0 : index
    %3 = vector.load %arg4[%c0, %c0_1, %c0_2] : memref<1x2x128xf32, #tpu.memory_space<vmem>>, vector<1x2x128xf32>
    %c0_3 = arith.constant 0 : index
    %c0_4 = arith.constant 0 : index
    %4 = vector.load %arg2[%c0_3, %c0_4] : memref<2x256xf32, #tpu.memory_space<vmem>>, vector<2x256xf32>
    %c0_5 = arith.constant 0 : index
    %c0_6 = arith.constant 0 : index
    %5 = vector.load %arg3[%c0_5, %c0_6] : memref<256x128xf32, #tpu.memory_space<vmem>>, vector<256x128xf32>
    %cst = arith.constant dense<0.000000e+00> : vector<2x128xf32>
    %6 = tpu.matmul %4, %5, %cst {dimension_numbers = #tpu.dot_dimension_numbers<[1], [0], [0], [1], [0, 0, 1, 1], [], []>} : vector<2x256xf32>, vector<256x128xf32>, vector<2x128xf32> -> vector<2x128xf32>
    %7 = vector.shape_cast %6 : vector<2x128xf32> to vector<1x2x128xf32>
    %8 = arith.addf %3, %7 : vector<1x2x128xf32>
    %c0_7 = arith.constant 0 : index
    %c0_8 = arith.constant 0 : index
    %c0_9 = arith.constant 0 : index
    %9 = vector.load %arg4[%c0_7, %c0_8, %c0_9] : memref<1x2x128xf32, #tpu.memory_space<vmem>>, vector<1x2x128xf32>
    tpu.vector_store %arg4[%c0_7, %c0_8, %c0_9], %8 {strides = array<i32>} : memref<1x2x128xf32, #tpu.memory_space<vmem>>, vector<1x2x128xf32>,
    return
  }
  func.func @transform_0(%arg0: i32, %arg1: i32) -> (i32, i32) {
    %c1_i32 = arith.constant 1 : i32
    %0 = arith.muli %arg0, %c1_i32 : i32
    %1 = arith.addi %0, %arg1 : i32
    %c0_i32 = arith.constant 0 : i32
    %c0_i32_0 = arith.constant 0 : i32
    return %c0_i32, %1 : i32, i32
  }
  func.func @transform_1(%arg0: i32, %arg1: i32) -> (i32, i32) {
    %c1_i32 = arith.constant 1 : i32
    %0 = arith.muli %arg0, %c1_i32 : i32
    %1 = arith.addi %0, %arg1 : i32
    %c0_i32 = arith.constant 0 : i32
    %c0_i32_0 = arith.constant 0 : i32
    return %1, %c0_i32 : i32, i32
  }
  func.func @transform_2(%arg0: i32, %arg1: i32) -> (i32, i32, i32) {
    %c0_i32 = arith.constant 0 : i32
    %c0_i32_0 = arith.constant 0 : i32
    %c0_i32_1 = arith.constant 0 : i32
    return %arg0, %c0_i32, %c0_i32_0 : i32, i32, i32
  }
}

</mosaic_0001>

<llo_original>
// kernel: tpu_custom_call.1
$region0: #{tpu_custom_call.1}
  #allocation0 [shape = 'u32[]', space=smem, size = 0x4, offset = 0x4, fixed_abs, tag = 'smem constant byte address 0x4 - core index']
  #allocation1 [shape = 'u32[144,128]{1,0:T(1,128)}', space=vmem, size = 0x12000, scoped, tag = 'internal scratch']
  %s0 = inlined_call_operand.hbm [shape: f32[2,256], index: 0, kind: input, shape index: {}]
  %s1 = inlined_call_operand.hbm [shape: f32[256,128], index: 1, kind: input, shape index: {}]
  %s2 = inlined_call_operand.hbm [shape: f32[1,2,128], index: 2, kind: output, shape index: {}]
  %s3 = sld [smem:[#allocation0]]
  $region30: #{tpu_custom_call.1} parent=0
    _
  %s5 = ssub.s32 1, %s3
  %s6 = scalar_select 0, %s5, %s3
  $region1: #{tpu_custom_call.1} parent=0
    #allocation2 [shape = 'u8[2048]{0}', space=vmem, size = 0x800, scoped, tag = 'input window, operand 0, single buffered']
    #allocation3 [shape = 's32[1]{0}', space=sflag, size = 0x4, scoped, tag = 'scoped memory for tpu_custom_call.1']
    #allocation4 [shape = 's32[1]{0}', space=sflag, size = 0x4, scoped, tag = 'scoped memory for tpu_custom_call.1']
    #allocation5 [shape = 'u8[131072]{0}', space=vmem, size = 0x20000, scoped, tag = 'input window, operand 1, single buffered']
    #allocation6 [shape = 's32[1]{0}', space=sflag, size = 0x4, scoped, tag = 'scoped memory for tpu_custom_call.1']
    #allocation7 [shape = 'u8[1024]{0}', space=vmem, size = 0x400, scoped, tag = 'output window, operand 0, single buffered']
    %7 = vsyncpa [#allocation3], 0
    %8 = vsyncpa [#allocation6], 0
    %9 = vsyncpa [#allocation4], 0
    // Predicated region
    $region2: #{tpu_custom_call.1} parent=1 // pred_check
      _
    $region3: #{tpu_custom_call.1} parent=1 // pred_check_branch
      %11 = sbr.rel (0) target = $region5
    $region4: #{tpu_custom_call.1} parent=1 // pred_region
      %s12 = sadd.s32 0, 0
      %s13 = smul.u32 2, %s12
      %s15 = ssub.s32 64, 64
      %16 = vsyncadd [#allocation3], %s15
      %s17 = smul.addr %s13, 32
      %s18 = scalar_lea.hbm %s0, %s17
      %s20 = sshll.u32 [#allocation2], 4
      %s21 = int_to_ptr.vmem [resolvable:$true] %s20
      %23 = dma.hbm_to_vmem [thread:$0]  %s18, 64, %s21, [#allocation3]
    $region5: #{tpu_custom_call.1} parent=1 // pred_fallthru
      _
    // Predicated region
    $region6: #{tpu_custom_call.1} parent=1 // pred_check
      _
    $region7: #{tpu_custom_call.1} parent=1 // pred_check_branch
      %25 = sbr.rel (0) target = $region9
    $region8: #{tpu_custom_call.1} parent=1 // pred_region
      %s26 = sadd.s32 0, 0
      %s27 = smul.u32 32, %s26
      %s29 = ssub.s32 4096, 4096
      %30 = vsyncadd [#allocation6], %s29
      %s31 = smul.addr %s27, 128
      %s32 = scalar_lea.hbm %s1, %s31
      %s33 = sshll.u32 [#allocation5], 4
      %s34 = int_to_ptr.vmem [resolvable:$true] %s33
      %39 = dma.hbm_to_vmem [thread:$0]  %s32, 4096, %s34, [#allocation6], 128, 128, 8
    $region9: #{tpu_custom_call.1} parent=1 // pred_fallthru
      _
    // Predicated region
    $region10: #{tpu_custom_call.1} parent=1 // pred_check
      _
    $region11: #{tpu_custom_call.1} parent=1 // pred_check_branch
      %41 = sbr.rel (0) target = $region13
    $region12: #{tpu_custom_call.1} parent=1 // pred_region
      %42 = dma.done [#allocation3], 64
    $region13: #{tpu_custom_call.1} parent=1 // pred_fallthru
      _
    // Predicated region
    $region14: #{tpu_custom_call.1} parent=1 // pred_check
      _
    $region15: #{tpu_custom_call.1} parent=1 // pred_check_branch
      %44 = sbr.rel (0) target = $region17
    $region16: #{tpu_custom_call.1} parent=1 // pred_region
      %45 = dma.done [#allocation6], 4096
    $region17: #{tpu_custom_call.1} parent=1 // pred_fallthru
      _
    %s46 = sadd.s32 0, 0
    %s47 = smul.u32 2, %s46
    %s48 = sadd.s32 0, 0
    %s49 = smul.u32 32, %s48
    %p50 = scmp.eq.s32.totalorder 0, 0
    // Predicated region
    $region18: #{tpu_custom_call.1} parent=1 // pred_check
      %p51 = pneg %p50
    $region19: #{tpu_custom_call.1} parent=1 // pred_check_branch
      %53 = sbr.rel (%p51) target = $region21
    $region20: #{tpu_custom_call.1} parent=1 // pred_region
      %54 = vst [vmem:[#allocation7] sm:$0x3] 0.0
    $region21: #{tpu_custom_call.1} parent=1 // pred_fallthru
      _
    %v55 = vld [vmem:[#allocation7] sm:$0x3]
    %v56 = vld [vmem:[#allocation2] sm:$0xf]
    %v57 = vld [vmem:[#allocation5] sm:$0xff]
    %v58 = vld [vmem:[#allocation5 + $0x8] sm:$0xff]
    %v59 = vld [vmem:[#allocation5 + $0x10] sm:$0xff]
    %v60 = vld [vmem:[#allocation5 + $0x18] sm:$0xff]
    %v61 = vld [vmem:[#allocation5 + $0x20] sm:$0xff]
    %v62 = vld [vmem:[#allocation5 + $0x28] sm:$0xff]
    %v63 = vld [vmem:[#allocation5 + $0x30] sm:$0xff]
    %v64 = vld [vmem:[#allocation5 + $0x38] sm:$0xff]
    %v65 = vld [vmem:[#allocation5 + $0x40] sm:$0xff]
    %v66 = vld [vmem:[#allocation5 + $0x48] sm:$0xff]
    %v67 = vld [vmem:[#allocation5 + $0x50] sm:$0xff]
    %v68 = vld [vmem:[#allocation5 + $0x58] sm:$0xff]
    %v69 = vld [vmem:[#allocation5 + $0x60] sm:$0xff]
    %v70 = vld [vmem:[#allocation5 + $0x68] sm:$0xff]
    %v71 = vld [vmem:[#allocation5 + $0x70] sm:$0xff]
    %v72 = vld [vmem:[#allocation5 + $0x78] sm:$0xff]
    %v73 = vld [vmem:[#allocation5 + $0x80] sm:$0xff]
    %v74 = vld [vmem:[#allocation5 + $0x88] sm:$0xff]
    %v75 = vld [vmem:[#allocation5 + $0x90] sm:$0xff]
    %v76 = vld [vmem:[#allocation5 + $0x98] sm:$0xff]
    %v77 = vld [vmem:[#allocation5 + $0xa0] sm:$0xff]
    %v78 = vld [vmem:[#allocation5 + $0xa8] sm:$0xff]
    %v79 = vld [vmem:[#allocation5 + $0xb0] sm:$0xff]
    %v80 = vld [vmem:[#allocation5 + $0xb8] sm:$0xff]
    %v81 = vld [vmem:[#allocation5 + $0xc0] sm:$0xff]
    %v82 = vld [vmem:[#allocation5 + $0xc8] sm:$0xff]
    %v83 = vld [vmem:[#allocation5 + $0xd0] sm:$0xff]
    %v84 = vld [vmem:[#allocation5 + $0xd8] sm:$0xff]
    %v85 = vld [vmem:[#allocation5 + $0xe0] sm:$0xff]
    %v86 = vld [vmem:[#allocation5 + $0xe8] sm:$0xff]
    %v87 = vld [vmem:[#allocation5 + $0xf0] sm:$0xff]
    %v88 = vld [vmem:[#allocation5 + $0xf8] sm:$0xff]
    %v91 = vunpack.c.l.s4 1983009808
    %v92 = vunpack.c.0.s8 %v91
    %v93 = vlaneseq
    %v94 = vshrl.u32 %v93, 7
    %v95 = vsub.s32 %v92, %v94
    %v96 = vrot.slane %v56, %v95
    %v97 = vcombine.high %v96, %v96
    %100 = vmatprep.subr.mxu0 0.0
    %101 = vmatpush1.msra.mxu0 %v72
    %102 = vmatprep.subr.mxu0 0.0
    %103 = vmatpush1.msra.mxu0 %v71
    %104 = vmatprep.subr.mxu0 0.0
    %105 = vmatpush1.msra.mxu0 %v70
    %106 = vmatprep.subr.mxu0 0.0
    %107 = vmatpush1.msra.mxu0 %v69
    %108 = vmatprep.subr.mxu0 0.0
    %109 = vmatpush1.msra.mxu0 %v68
    %110 = vmatprep.subr.mxu0 0.0
    %111 = vmatpush1.msra.mxu0 %v67
    %112 = vmatprep.subr.mxu0 0.0
    %113 = vmatpush1.msra.mxu0 %v66
    %114 = vmatprep.subr.mxu0 0.0
    %115 = vmatpush1.msra.mxu0 %v65
    %116 = vmatprep.subr.mxu0 0.0
    %117 = vmatpush1.msra.mxu0 %v64
    %118 = vmatprep.subr.mxu0 0.0
    %119 = vmatpush1.msra.mxu0 %v63
    %120 = vmatprep.subr.mxu0 0.0
    %121 = vmatpush1.msra.mxu0 %v62
    %122 = vmatprep.subr.mxu0 0.0
    %123 = vmatpush1.msra.mxu0 %v61
    %124 = vmatprep.subr.mxu0 0.0
    %125 = vmatpush1.msra.mxu0 %v60
    %126 = vmatprep.subr.mxu0 0.0
    %127 = vmatpush1.msra.mxu0 %v59
    %128 = vmatprep.subr.mxu0 0.0
    %129 = vmatpush1.msra.mxu0 %v58
    %130 = vmatprep.subr.mxu0 0.0
    %131 = vmatpush1.msra.mxu0 %v57
    %132 = vmatprep.subr.mxu0 0.0
    %133 = vmatpush2.msra.mxu0 %v88
    %134 = vmatprep.subr.mxu0 0.0
    %135 = vmatpush2.msra.mxu0 %v87
    %136 = vmatprep.subr.mxu0 0.0
    %137 = vmatpush2.msra.mxu0 %v86
    %138 = vmatprep.subr.mxu0 0.0
    %139 = vmatpush2.msra.mxu0 %v85
    %140 = vmatprep.subr.mxu0 0.0
    %141 = vmatpush2.msra.mxu0 %v84
    %142 = vmatprep.subr.mxu0 0.0
    %143 = vmatpush2.msra.mxu0 %v83
    %144 = vmatprep.subr.mxu0 0.0
    %145 = vmatpush2.msra.mxu0 %v82
    %146 = vmatprep.subr.mxu0 0.0
    %147 = vmatpush2.msra.mxu0 %v81
    %148 = vmatprep.subr.mxu0 0.0
    %149 = vmatpush2.msra.mxu0 %v80
    %150 = vmatprep.subr.mxu0 0.0
    %151 = vmatpush2.msra.mxu0 %v79
    %152 = vmatprep.subr.mxu0 0.0
    %153 = vmatpush2.msra.mxu0 %v78
    %154 = vmatprep.subr.mxu0 0.0
    %155 = vmatpush2.msra.mxu0 %v77
    %156 = vmatprep.subr.mxu0 0.0
    %157 = vmatpush2.msra.mxu0 %v76
    %158 = vmatprep.subr.mxu0 0.0
    %159 = vmatpush2.msra.mxu0 %v75
    %160 = vmatprep.subr.mxu0 0.0
    %161 = vmatpush2.msra.mxu0 %v74
    %162 = vmatprep.subr.mxu0 0.0
    %163 = vmatpush2.msra.mxu0 %v73
    %164 = vmatprep.mubr.f32.mxu0 %v97
    %165 = vmatmul.mubr.f32.gmra.mxu0 %v96
    %v166 = vpop.f32.mrf.mxu0
    %v167 = vadd.f32 0.0, %v166
    %v168 = vpop.f32.mrf.mxu0
    %169 = vdwg.mxu0
    %v170 = vadd.f32 %v55, %v167
    %171 = vst [vmem:[#allocation7] sm:$0x3] %v170
    // Predicated region
    $region22: #{tpu_custom_call.1} parent=1 // pred_check
      _
    $region23: #{tpu_custom_call.1} parent=1 // pred_check_branch
      %173 = sbr.rel (0) target = $region25
    $region24: #{tpu_custom_call.1} parent=1 // pred_region
      %s175 = ssub.s32 32, 32
      %176 = vsyncadd [#allocation4], %s175
      %s178 = sshll.u32 [#allocation7], 4
      %s179 = int_to_ptr.vmem [resolvable:$true] %s178
      %181 = dma.vmem_to_hbm [thread:$0]  %s179, 32, %s2, [#allocation4]
    $region25: #{tpu_custom_call.1} parent=1 // pred_fallthru
      _
    // Predicated region
    $region26: #{tpu_custom_call.1} parent=1 // pred_check
      _
    $region27: #{tpu_custom_call.1} parent=1 // pred_check_branch
      %183 = sbr.rel (0) target = $region29
    $region28: #{tpu_custom_call.1} parent=1 // pred_region
      %184 = dma.done [#allocation4], 32
    $region29: #{tpu_custom_call.1} parent=1 // pred_fallthru
      _
    %185 = vsyncpa [#allocation3], 1
    %186 = vsyncpa [#allocation6], 1
    %187 = vsyncpa [#allocation4], 1

</llo_original>
